<compile_context>
chip_gen: v7x
topology: tpu7x:2x2x1
jax: 0.10.0
libtpu: 0.0.40
codegen_flags: <defaults>
</compile_context>

<pallas_src>
import functools

import jax
import jax.numpy as jnp
from jax import lax
from jax.experimental import pallas as pl
from jax.experimental.pallas import tpu as pltpu

_HI = jax.lax.Precision.HIGHEST  # keep f32 accuracy in the tiny segment matmuls


def _layernorm_kernel(x_ref, g_ref, b_ref, o_ref, *, epsilon: float,
                      seg: int, nseg: int):
    """One row tile. x_ref: (tr, L), g_ref/b_ref: (1, L), o_ref: (tr, L).

    L == nseg * seg; each tile row holds `nseg` independent feature vectors of
    length `seg` packed along the 128-wide lane dim (nseg == 1 is the ordinary
    unpacked layout).
    """
    x = x_ref[...].astype(jnp.float32)
    gain = g_ref[...].astype(jnp.float32)   # (1, L) broadcasts over rows
    bias = b_ref[...].astype(jnp.float32)
    eps = jnp.float32(epsilon)

    if nseg == 1:
        # Plain row-wise LayerNorm over the last axis.
        mean = jnp.mean(x, axis=-1, keepdims=True)
        diff = x - mean
        # torch.std default: Bessel's correction (divide by N-1). seg == 1
        # yields NaN, intentionally matching torch's single-element std.
        var = jnp.sum(diff * diff, axis=-1, keepdims=True) / jnp.float32(seg - 1)
        inv = jnp.float32(1.0) / (jnp.sqrt(var) + eps)        # (tr, 1) column
        y = diff * inv * gain + bias
    else:
        L = nseg * seg
        # 0/1 segment-membership matrices built from iota (lowers cleanly):
        # S: (L, nseg) folds lanes -> segments, S_T: (nseg, L) broadcasts back.
        lane = lax.broadcasted_iota(jnp.int32, (L, nseg), 0)
        sid = lax.broadcasted_iota(jnp.int32, (L, nseg), 1)
        S = (lane // seg == sid).astype(jnp.float32)
        lane_t = lax.broadcasted_iota(jnp.int32, (nseg, L), 1)
        sid_t = lax.broadcasted_iota(jnp.int32, (nseg, L), 0)
        S_T = (lane_t // seg == sid_t).astype(jnp.float32)

        sums = jnp.dot(x, S, precision=_HI, preferred_element_type=jnp.float32)
        mean = sums * jnp.float32(1.0 / seg)                  # (tr, nseg)
        diff = x - jnp.dot(mean, S_T, precision=_HI,
                           preferred_element_type=jnp.float32)
        sq = jnp.dot(diff * diff, S, precision=_HI,
                     preferred_element_type=jnp.float32)
        var = sq * jnp.float32(1.0 / (seg - 1))               # (tr, nseg)
        inv = jnp.float32(1.0) / (jnp.sqrt(var) + eps)        # (tr, nseg), cheap
        inv_b = jnp.dot(inv, S_T, precision=_HI,
                        preferred_element_type=jnp.float32)   # (tr, L)
        y = diff * inv_b * gain + bias

    o_ref[...] = y.astype(o_ref.dtype)


def _pick_tile_rows(rows: int, d: int, itemsize: int) -> tuple[int, int]:
    """Choose the row tile from the VMEM budget; return (tile_rows, vmem_limit)."""
    try:
        vmem_capacity = int(pltpu.get_tpu_info().vmem_capacity_bytes)
    except Exception:  # conservative fallback (v7x-sized)
        vmem_capacity = 64 * 1024 * 1024

    # Native sublane packing for the dtype: f32 -> 8, bf16 -> 16, int8/fp8 -> 32.
    mult = max(8, 32 // max(itemsize, 1))

    # Per-row VMEM cost of one grid step:
    #   2x double-buffered (input + output) tiles in the native dtype
    #   + ~3 f32 working tiles (upcast x, diff, y) inside the kernel body.
    bytes_per_row = d * (2 * 2 * itemsize + 3 * 4)
    budget = vmem_capacity // 4
    tr = budget // max(bytes_per_row, 1)

    # Cap: at least 1024 rows, but for small D keep growing until each tile
    # moves >= ~4 MiB of HBM traffic (amortizes the ~0.35 us/grid-step cost).
    row_bytes = max(d * itemsize, 1)
    tr_cap = max(1024, -(-(4 * 1024 * 1024) // row_bytes))
    tr = min(tr, tr_cap)

    if tr >= rows:
        tr = rows                              # single block == full extent (legal)
    else:
        tr = max((tr // mult) * mult, mult)    # sublane-aligned tile

    need = (2 * 2 * tr * d * itemsize          # double-buffered in/out tiles
            + 3 * tr * d * 4                   # f32 intermediates in the body
            + 2 * 2 * d * itemsize)            # gain + bias
    vmem_limit = max(2 * need, 32 * 1024 * 1024)
    vmem_limit = min(vmem_limit, vmem_capacity - 8 * 1024 * 1024)
    vmem_limit = max(vmem_limit, need + 4 * 1024 * 1024)
    vmem_limit = min(vmem_limit, vmem_capacity)
    return int(tr), int(vmem_limit)


def _ln_call(x2: jax.Array, g2: jax.Array, b2: jax.Array, *, seg: int,
             nseg: int, epsilon: float) -> jax.Array:
    rows, L = x2.shape
    itemsize = jnp.dtype(x2.dtype).itemsize
    tr, vmem_limit = _pick_tile_rows(rows, L, itemsize)
    grid = (pl.cdiv(rows, tr),)

    kernel = functools.partial(_layernorm_kernel, epsilon=float(epsilon),
                               seg=seg, nseg=nseg)

    def call(dim_sem):
        return pl.pallas_call(
            kernel,
            out_shape=jax.ShapeDtypeStruct((rows, L), x2.dtype),
            grid=grid,
            in_specs=[
                pl.BlockSpec((tr, L), lambda i: (i, 0)),   # x row tile
                pl.BlockSpec((1, L), lambda i: (0, 0)),    # gain (stays resident)
                pl.BlockSpec((1, L), lambda i: (0, 0)),    # bias (stays resident)
            ],
            out_specs=pl.BlockSpec((tr, L), lambda i: (i, 0)),
            compiler_params=pltpu.CompilerParams(
                dimension_semantics=dim_sem,
                vmem_limit_bytes=vmem_limit,
            ),
        )(x2, g2, b2)

    # v7x: CORE_PARALLEL actually splits row tiles across the two TensorCores
    # ("parallel" vs "arbitrary" is a measured no-op); fall back where the
    # backend rejects it (single-core generations).
    candidates = []
    if grid[0] >= 2 and hasattr(pltpu, "CORE_PARALLEL"):
        candidates.append((pltpu.CORE_PARALLEL,))
    candidates.append((pltpu.ARBITRARY,))

    err = None
    for sem in candidates:
        try:
            return call(sem)
        except Exception as e:  # unsupported dimension semantics on this chip
            err = e
    raise err


def layer_normalization(x: jax.Array, gain: jax.Array, bias: jax.Array,
                        epsilon: float = 1e-6) -> jax.Array:
    """x: [..., D]; gain/bias: [D]. Normalizes over the last axis."""
    orig_shape = x.shape
    d = int(orig_shape[-1])
    rows = 1
    for s in orig_shape[:-1]:
        rows *= int(s)

    x2 = x.reshape(rows, d)
    g1 = gain.reshape(-1)
    b1 = bias.reshape(-1)

    # Small-D lane packing: fold k = 128 // D rows into the 128-lane dimension
    # (metadata-only reshape) so loads/stores are lane-dense.
    k = 128 // d if (1 < d < 128 and 128 % d == 0) else 1
    if k > 1 and rows >= k and rows % k == 0:
        # TODO(synk): rows % k != 0 could use a lane-packed main body plus an
        # unpacked tail instead of falling back entirely.
        try:
            xp = x2.reshape(rows // k, k * d)
            gp = jnp.tile(g1, (k,)).reshape(1, k * d)
            bp = jnp.tile(b1, (k,)).reshape(1, k * d)
            outp = _ln_call(xp, gp, bp, seg=d, nseg=k, epsilon=epsilon)
            return outp.reshape(orig_shape)
        except Exception:
            pass  # fall through to the plain (unpacked) path

    out2 = _ln_call(x2, g1.reshape(1, d), b1.reshape(1, d),
                    seg=d, nseg=1, epsilon=epsilon)
    return out2.reshape(orig_shape)


def _reference(x, gain, bias, epsilon=1e-6):
    # Pure-JAX reference mirroring the PyTorch forward (unbiased std, eps on std).
    mean = jnp.mean(x, axis=-1, keepdims=True)
    d = x.shape[-1]
    var = jnp.sum((x - mean) ** 2, axis=-1, keepdims=True) / (d - 1)
    std = jnp.sqrt(var)
    return gain * (x - mean) / (std + epsilon) + bias


if __name__ == "__main__":
    key = jax.random.PRNGKey(0)
    batch, seq, hidden = 2, 8, 32

    x = jax.random.normal(key, (batch, seq, hidden), dtype=jnp.float32)

    # Deterministic params, matching nn.Parameter(torch.ones/zeros(features_count)).
    gain = jnp.ones((hidden,), dtype=jnp.float32)
    bias = jnp.zeros((hidden,), dtype=jnp.float32)

    out = layer_normalization(x, gain, bias, epsilon=1e-6)
    out = jax.block_until_ready(out)

    ref = _reference(x, gain, bias, epsilon=1e-6)
    assert out.shape == x.shape
    assert jnp.allclose(out, ref, atol=1e-4, rtol=1e-4), "mismatch vs reference"

    print("KERNEL_OK")
</pallas_src>

<mosaic_0001>
module attributes {stable_mosaic.version = 11 : i64} {
  func.func @_layernorm_kernel(%arg0: i32, %arg1: memref<16x32xf32, #tpu.memory_space<vmem>>, %arg2: memref<1x32xf32, #tpu.memory_space<vmem>>, %arg3: memref<1x32xf32, #tpu.memory_space<vmem>>, %arg4: memref<16x32xf32, #tpu.memory_space<vmem>>) attributes {dimension_semantics = [#tpu.dimension_semantics<arbitrary>], iteration_bounds = array<i64: 1>, scalar_prefetch = 0 : i64, scratch_operands = 0 : i64, tpu.core_type = #tpu.core_type<tc>, window_params = [{transform_indices = @transform_0, window_bounds = array<i64: 16, 32>}, {pipeline_mode = #tpu.pipeline_mode<synchronous>, transform_indices = @transform_1, window_bounds = array<i64: 1, 32>}, {pipeline_mode = #tpu.pipeline_mode<synchronous>, transform_indices = @transform_2, window_bounds = array<i64: 1, 32>}, {transform_indices = @transform_3, window_bounds = array<i64: 16, 32>}]} {
    %c0 = arith.constant 0 : index
    %c0_0 = arith.constant 0 : index
    %0 = vector.load %arg1[%c0, %c0_0] : memref<16x32xf32, #tpu.memory_space<vmem>>, vector<16x32xf32>
    %c0_1 = arith.constant 0 : index
    %c0_2 = arith.constant 0 : index
    %1 = vector.load %arg2[%c0_1, %c0_2] : memref<1x32xf32, #tpu.memory_space<vmem>>, vector<1x32xf32>
    %c0_3 = arith.constant 0 : index
    %c0_4 = arith.constant 0 : index
    %2 = vector.load %arg3[%c0_3, %c0_4] : memref<1x32xf32, #tpu.memory_space<vmem>>, vector<1x32xf32>
    %cst = arith.constant dense<0.000000e+00> : vector<16xf32>
    %3 = vector.multi_reduction <add>, %0, %cst [1] : vector<16x32xf32> to vector<16xf32>
    %4 = vector.shape_cast %3 : vector<16xf32> to vector<16x1xf32>
    %cst_5 = arith.constant 3.200000e+01 : f32
    %5 = vector.broadcast %cst_5 : f32 to vector<16x1xf32>
    %6 = arith.divf %4, %5 : vector<16x1xf32>
    %7 = vector.broadcast %6 : vector<16x1xf32> to vector<16x32xf32>
    %8 = arith.subf %0, %7 : vector<16x32xf32>
    %9 = arith.mulf %8, %8 : vector<16x32xf32>
    %cst_6 = arith.constant dense<0.000000e+00> : vector<16xf32>
    %10 = vector.multi_reduction <add>, %9, %cst_6 [1] : vector<16x32xf32> to vector<16xf32>
    %11 = vector.shape_cast %10 : vector<16xf32> to vector<16x1xf32>
    %cst_7 = arith.constant 3.100000e+01 : f32
    %12 = vector.broadcast %cst_7 : f32 to vector<16x1xf32>
    %13 = arith.divf %11, %12 : vector<16x1xf32>
    %14 = math.sqrt %13 : vector<16x1xf32>
    %cst_8 = arith.constant 9.99999997E-7 : f32
    %15 = vector.broadcast %cst_8 : f32 to vector<16x1xf32>
    %16 = arith.addf %14, %15 : vector<16x1xf32>
    %cst_9 = arith.constant 1.000000e+00 : f32
    %17 = vector.broadcast %cst_9 : f32 to vector<16x1xf32>
    %18 = arith.divf %17, %16 : vector<16x1xf32>
    %19 = vector.broadcast %18 : vector<16x1xf32> to vector<16x32xf32>
    %20 = arith.mulf %8, %19 : vector<16x32xf32>
    %21 = vector.broadcast %1 : vector<1x32xf32> to vector<16x32xf32>
    %22 = arith.mulf %20, %21 : vector<16x32xf32>
    %23 = vector.broadcast %2 : vector<1x32xf32> to vector<16x32xf32>
    %24 = arith.addf %22, %23 : vector<16x32xf32>
    %c0_10 = arith.constant 0 : index
    %c0_11 = arith.constant 0 : index
    %25 = vector.load %arg4[%c0_10, %c0_11] : memref<16x32xf32, #tpu.memory_space<vmem>>, vector<16x32xf32>
    tpu.vector_store %arg4[%c0_10, %c0_11], %24 {strides = array<i32>} : memref<16x32xf32, #tpu.memory_space<vmem>>, vector<16x32xf32>,
    return
  }
  func.func @transform_0(%arg0: i32) -> (i32, i32) {
    %c0_i32 = arith.constant 0 : i32
    %c0_i32_0 = arith.constant 0 : i32
    return %arg0, %c0_i32 : i32, i32
  }
  func.func @transform_1(%arg0: i32) -> (i32, i32) {
    %c0_i32 = arith.constant 0 : i32
    %c0_i32_0 = arith.constant 0 : i32
    %c0_i32_1 = arith.constant 0 : i32
    return %c0_i32, %c0_i32_0 : i32, i32
  }
  func.func @transform_2(%arg0: i32) -> (i32, i32) {
    %c0_i32 = arith.constant 0 : i32
    %c0_i32_0 = arith.constant 0 : i32
    %c0_i32_1 = arith.constant 0 : i32
    return %c0_i32, %c0_i32_0 : i32, i32
  }
  func.func @transform_3(%arg0: i32) -> (i32, i32) {
    %c0_i32 = arith.constant 0 : i32
    %c0_i32_0 = arith.constant 0 : i32
    return %arg0, %c0_i32 : i32, i32
  }
}

</mosaic_0001>

<llo_original>
// kernel: tpu_custom_call.1
$region0: #{tpu_custom_call.1}
  #allocation0 [shape = 'u32[]', space=smem, size = 0x4, offset = 0x4, fixed_abs, tag = 'smem constant byte address 0x4 - core index']
  #allocation1 [shape = 'u32[144,128]{1,0:T(1,128)}', space=vmem, size = 0x12000, scoped, tag = 'internal scratch']
  %s0 = inlined_call_operand.hbm [shape: f32[16,32], index: 0, kind: input, shape index: {}]
  %s1 = inlined_call_operand.vmem [shape: f32[1,32], index: 1, kind: input, shape index: {}]
  %s2 = inlined_call_operand.vmem [shape: f32[1,32], index: 2, kind: input, shape index: {}]
  %s3 = inlined_call_operand.hbm [shape: f32[16,32], index: 3, kind: output, shape index: {}]
  %s4 = sld [smem:[#allocation0]]
  $region26: #{tpu_custom_call.1} parent=0
    _
  %s6 = ssub.s32 1, %s4
  %s7 = scalar_select 0, %s6, %s4
  $region1: #{tpu_custom_call.1} parent=0
    #allocation2 [shape = 'u8[8192]{0}', space=vmem, size = 0x2000, scoped, tag = 'input window, operand 0, single buffered']
    #allocation3 [shape = 's32[1]{0}', space=sflag, size = 0x4, scoped, tag = 'scoped memory for tpu_custom_call.1']
    #allocation4 [shape = 's32[1]{0}', space=sflag, size = 0x4, scoped, tag = 'scoped memory for tpu_custom_call.1']
    #allocation5 [shape = 'u8[8192]{0}', space=vmem, size = 0x2000, scoped, tag = 'output window, operand 0, single buffered']
    %8 = vsyncpa [#allocation3], 0
    %9 = vsyncpa [#allocation4], 0
    // Predicated region
    $region2: #{tpu_custom_call.1} parent=1 // pred_check
      _
    $region3: #{tpu_custom_call.1} parent=1 // pred_check_branch
      %11 = sbr.rel (0) target = $region5
    $region4: #{tpu_custom_call.1} parent=1 // pred_region
      %s13 = ssub.s32 256, 256
      %14 = vsyncadd [#allocation3], %s13
      %s15 = sshll.u32 [#allocation2], 4
      %s16 = int_to_ptr.vmem [resolvable:$true] %s15
      %21 = dma.hbm_to_vmem [thread:$0]  %s0, 256, %s16, [#allocation3], 128, 128, 8
    $region5: #{tpu_custom_call.1} parent=1 // pred_fallthru
      _
    // Predicated region
    $region6: #{tpu_custom_call.1} parent=1 // pred_check
      _
    $region7: #{tpu_custom_call.1} parent=1 // pred_check_branch
      %23 = sbr.rel (0) target = $region9
    $region8: #{tpu_custom_call.1} parent=1 // pred_region
      _
    $region9: #{tpu_custom_call.1} parent=1 // pred_fallthru
      _
    // Predicated region
    $region10: #{tpu_custom_call.1} parent=1 // pred_check
      _
    $region11: #{tpu_custom_call.1} parent=1 // pred_check_branch
      %25 = sbr.rel (0) target = $region13
    $region12: #{tpu_custom_call.1} parent=1 // pred_region
      _
    $region13: #{tpu_custom_call.1} parent=1 // pred_fallthru
      _
    // Predicated region
    $region14: #{tpu_custom_call.1} parent=1 // pred_check
      _
    $region15: #{tpu_custom_call.1} parent=1 // pred_check_branch
      %27 = sbr.rel (0) target = $region17
    $region16: #{tpu_custom_call.1} parent=1 // pred_region
      %28 = dma.done [#allocation3], 256
    $region17: #{tpu_custom_call.1} parent=1 // pred_fallthru
      _
    %v29 = vld [vmem:[#allocation2] sm:$0xff]
    %v30 = vld [vmem:[#allocation2 + $0x8] sm:$0xff]
    %v31 = vld [vmem:[%s1] sm:$0x1]
    %v32 = vld [vmem:[%s2] sm:$0x1]
    %vm33 = vcmask 261120
    %v34 = vsel %vm33, %v29, 0.0
    %35 = vadd.xlane.f32.xlu0 %v34
    %v36 = vpop.xlane.xlu0 %35
    %v37 = vsel %vm33, %v30, 0.0
    %38 = vadd.xlane.f32.xlu0 %v37
    %v39 = vpop.xlane.xlu0 %38
    %v40 = vrcp.pop 32.0
    %v41 = vmul.f32 %v36, %v40
    %v42 = vmul.f32 %v39, %v40
    %v43 = vsub.f32 %v29, %v41
    %v44 = vsub.f32 %v30, %v42
    %v45 = vmul.f32 %v43, %v43
    %v46 = vmul.f32 %v44, %v44
    %v47 = vsel %vm33, %v45, 0.0
    %48 = vadd.xlane.f32.xlu0 %v47
    %v49 = vpop.xlane.xlu0 %48
    %v50 = vsel %vm33, %v46, 0.0
    %51 = vadd.xlane.f32.xlu0 %v50
    %v52 = vpop.xlane.xlu0 %51
    %v53 = vrcp.pop 31.0
    %v54 = vmul.f32 %v49, %v53
    %v55 = vmul.f32 %v52, %v53
    %v56 = vrsqrt.pop %v54
    %v57 = vmul.f32 %v54, %v56
    %vm58 = vcmp.eq.f32.partialorder %v54, inf
    %v59 = vsel %vm58, %v54, %v57
    %vm60 = vcmp.eq.f32.partialorder %v54, 0.0
    %v61 = vand.u32 %v54, 2147483648
    %v62 = vsel %vm60, %v61, %v59
    %v63 = vrsqrt.pop %v55
    %v64 = vmul.f32 %v55, %v63
    %vm65 = vcmp.eq.f32.partialorder %v55, inf
    %v66 = vsel %vm65, %v55, %v64
    %vm67 = vcmp.eq.f32.partialorder %v55, 0.0
    %v68 = vand.u32 %v55, 2147483648
    %v69 = vsel %vm67, %v68, %v66
    %v70 = vadd.f32 %v62, 1e-06
    %v71 = vadd.f32 %v69, 1e-06
    %v72 = vrcp.pop %v70
    %v73 = vmul.f32 1.0, %v72
    %v74 = vrcp.pop %v71
    %v75 = vmul.f32 1.0, %v74
    %v76 = vmul.f32 %v43, %v73
    %v77 = vmul.f32 %v44, %v75
    %v79 = vlaneseq
    %v80 = vshrl.u32 %v79, 7
    %v81 = vsub.s32 0, %v80
    %v82 = vrot.slane %v31, %v81
    %v84 = vmul.f32 %v76, %v82
    %v85 = vmul.f32 %v77, %v82
    %v87 = vlaneseq
    %v88 = vshrl.u32 %v87, 7
    %v89 = vsub.s32 0, %v88
    %v90 = vrot.slane %v32, %v89
    %v92 = vadd.f32 %v84, %v90
    %v93 = vadd.f32 %v85, %v90
    %94 = vst.msk [vmem:[#allocation5] sm:$0xff] %vm33, %v92
    %95 = vst.msk [vmem:[#allocation5 + $0x8] sm:$0xff] %vm33, %v93
    // Predicated region
    $region18: #{tpu_custom_call.1} parent=1 // pred_check
      _
    $region19: #{tpu_custom_call.1} parent=1 // pred_check_branch
      %97 = sbr.rel (0) target = $region21
    $region20: #{tpu_custom_call.1} parent=1 // pred_region
      %s99 = ssub.s32 256, 256
      %100 = vsyncadd [#allocation4], %s99
      %s101 = sshll.u32 [#allocation5], 4
      %s102 = int_to_ptr.vmem [resolvable:$true] %s101
      %107 = dma.vmem_to_hbm [thread:$0]  %s102, 256, %s3, [#allocation4], 128, 128, 8
    $region21: #{tpu_custom_call.1} parent=1 // pred_fallthru
      _
    // Predicated region
    $region22: #{tpu_custom_call.1} parent=1 // pred_check
      _
    $region23: #{tpu_custom_call.1} parent=1 // pred_check_branch
      %109 = sbr.rel (0) target = $region25
    $region24: #{tpu_custom_call.1} parent=1 // pred_region
      %110 = dma.done [#allocation4], 256
    $region25: #{tpu_custom_call.1} parent=1 // pred_fallthru
      _
    %111 = vsyncpa [#allocation3], 1
    %112 = vsyncpa [#allocation4], 1

</llo_original>
